<compile_context>
chip_gen: v6e
topology: v6e:2x2x1
jax: 0.10.0
libtpu: 0.0.40
codegen_flags: <defaults>
</compile_context>

<pallas_src>
import jax
import jax.numpy as jnp
from jax.experimental import pallas as pl
from jax.experimental.pallas import tpu as pltpu


def _round_up(x, m):
    return ((x + m - 1) // m) * m


def _nbytes(shape, dtype):
    n = 1
    for d in shape:
        n *= int(d)
    return n * jnp.dtype(dtype).itemsize


# --------------------------------------------------------------------------
# Kernel 1: hoisted, batched projections over all tokens (single grid step).
#   keys/values fused into one (Hp, 2*Hp) matmul on the global features.
# --------------------------------------------------------------------------
def _proj_kernel(g_ref, l_ref, wkv_ref, bkv_ref, wq_ref, bq_ref, kv_ref, q_ref):
    # g_ref: (B*Sg, Hp) bf16, l_ref: (B*Sl, Hp) bf16
    # wkv_ref: (Hp, 2*Hp) bf16 = [Wk^T | Wv^T], bkv_ref: (1, 2*Hp) f32
    # wq_ref:  (Hp, Hp)  bf16 = Wq^T,           bq_ref:  (1, Hp)   f32
    kv = jnp.dot(g_ref[...], wkv_ref[...], preferred_element_type=jnp.float32)
    kv_ref[...] = (kv + bkv_ref[...]).astype(kv_ref.dtype)

    q = jnp.dot(l_ref[...], wq_ref[...], preferred_element_type=jnp.float32)
    q_ref[...] = (q + bq_ref[...]).astype(q_ref.dtype)


# --------------------------------------------------------------------------
# Kernel 2: attention + output projection, per block of batch elements.
# --------------------------------------------------------------------------
def _attn_kernel(q_ref, kv_ref, wc_ref, bc_ref, o_ref):
    # q_ref: (bb, Sl, Hp) bf16, kv_ref: (bb, Sg, 2*Hp) bf16
    # wc_ref: (Hp, Hp) bf16 (in, out), bc_ref: (1, Hp) f32, o_ref: (bb, Sl, Hp) f32
    hp = q_ref.shape[-1]
    q = q_ref[...]
    k = kv_ref[:, :, :hp]          # lane-aligned static slices of the fused KV block
    v = kv_ref[:, :, hp:]

    # Scores: contract hidden (last) dim of both operands -> no transpose needed.
    s = jnp.einsum("bqh,bkh->bqk", q, k, preferred_element_type=jnp.float32)

    # Numerically-stable softmax in f32, normalization deferred past the matmul.
    m = jnp.max(s, axis=-1, keepdims=True)
    e = jnp.exp(s - m)
    denom = jnp.sum(e, axis=-1, keepdims=True)

    ctx = jnp.einsum("bqk,bkh->bqh", e.astype(v.dtype), v,
                     preferred_element_type=jnp.float32)
    ctx = ctx * pl.reciprocal(denom, approx=True)     # broadcast over H (EUP)

    out = jnp.einsum("bqh,ho->bqo", ctx.astype(wc_ref.dtype), wc_ref[...],
                     preferred_element_type=jnp.float32) + bc_ref[...]
    o_ref[...] = out.astype(o_ref.dtype)


def custom_attention(global_features, local_features, params):
    """global_features: (B, Sg, H), local_features: (B, Sl, H) -> (B, Sl, H) f32."""
    B, Sg, H = global_features.shape
    _, Sl, _ = local_features.shape

    f32, bf16 = jnp.float32, jnp.bfloat16
    Hp = _round_up(H, 128)          # lane-dense hidden
    ph = Hp - H

    # ---- one-time layout plumbing in the wrapper (XLA, not per-grid-step) ----
    def prep_w(w):                  # (out, in) f32 -> (in, out) = (Hp, Hp) bf16
        return jnp.pad(w.T, ((0, ph), (0, ph))).astype(bf16)

    def prep_b(b):                  # (H,) f32 -> (1, Hp) f32
        return jnp.pad(b, ((0, ph),)).reshape(1, Hp).astype(f32)

    wk_t, bk = prep_w(params["wk"]), prep_b(params["bk"])
    wq_t, bq = prep_w(params["wq"]), prep_b(params["bq"])
    wv_t, bv = prep_w(params["wv"]), prep_b(params["bv"])
    wc_t, bc = prep_w(params["wc"]), prep_b(params["bc"])

    wkv_t = jnp.concatenate([wk_t, wv_t], axis=1)     # (Hp, 2*Hp)
    bkv = jnp.concatenate([bk, bv], axis=1)           # (1, 2*Hp)

    def prep_x(x):                  # pad hidden, cast bf16, flatten tokens
        xp = jnp.pad(x, ((0, 0), (0, 0), (0, ph))).astype(bf16)
        return xp.reshape(-1, Hp)

    g2 = prep_x(global_features)    # (B*Sg, Hp)
    l2 = prep_x(local_features)     # (B*Sl, Hp)
    Ng, Nl = B * Sg, B * Sl

    # ---------------- call 1: batched projections ----------------
    proj_vmem = 2 * (_nbytes((Ng, Hp), bf16) + _nbytes((Nl, Hp), bf16)
                     + _nbytes((Hp, 2 * Hp), bf16) + _nbytes((1, 2 * Hp), f32)
                     + _nbytes((Hp, Hp), bf16) + _nbytes((1, Hp), f32)
                     + _nbytes((Ng, 2 * Hp), bf16) + _nbytes((Nl, Hp), bf16))
    kv_flat, q_flat = pl.pallas_call(
        _proj_kernel,
        out_shape=(jax.ShapeDtypeStruct((Ng, 2 * Hp), bf16),
                   jax.ShapeDtypeStruct((Nl, Hp), bf16)),
        grid_spec=pltpu.PrefetchScalarGridSpec(
            num_scalar_prefetch=0,
            grid=(1,),
            in_specs=[
                pl.BlockSpec((Ng, Hp), lambda i: (0, 0)),
                pl.BlockSpec((Nl, Hp), lambda i: (0, 0)),
                pl.BlockSpec((Hp, 2 * Hp), lambda i: (0, 0)),
                pl.BlockSpec((1, 2 * Hp), lambda i: (0, 0)),
                pl.BlockSpec((Hp, Hp), lambda i: (0, 0)),
                pl.BlockSpec((1, Hp), lambda i: (0, 0)),
            ],
            out_specs=[
                pl.BlockSpec((Ng, 2 * Hp), lambda i: (0, 0)),
                pl.BlockSpec((Nl, Hp), lambda i: (0, 0)),
            ],
        ),
        compiler_params=pltpu.CompilerParams(
            dimension_semantics=("arbitrary",),
            vmem_limit_bytes=max(16 << 20, int(proj_vmem) + (2 << 20)),
        ),
    )(g2, l2, wkv_t, bkv, wq_t, bq)

    kv = kv_flat.reshape(B, Sg, 2 * Hp)
    q = q_flat.reshape(B, Sl, Hp)

    # ---------------- call 2: attention + output projection ----------------
    # Group several batch elements per grid step to amortize per-step overhead.
    bb = max(d for d in range(1, min(B, 8) + 1) if B % d == 0)
    attn_vmem = 2 * (_nbytes((bb, Sl, Hp), bf16) + _nbytes((bb, Sg, 2 * Hp), bf16)
                     + _nbytes((Hp, Hp), bf16) + _nbytes((1, Hp), f32)
                     + _nbytes((bb, Sl, Hp), f32))
    out_padded = pl.pallas_call(
        _attn_kernel,
        out_shape=jax.ShapeDtypeStruct((B, Sl, Hp), f32),
        grid_spec=pltpu.PrefetchScalarGridSpec(
            num_scalar_prefetch=0,
            grid=(B // bb,),
            in_specs=[
                pl.BlockSpec((bb, Sl, Hp), lambda i: (i, 0, 0)),
                pl.BlockSpec((bb, Sg, 2 * Hp), lambda i: (i, 0, 0)),
                pl.BlockSpec((Hp, Hp), lambda i: (0, 0)),
                pl.BlockSpec((1, Hp), lambda i: (0, 0)),
            ],
            out_specs=pl.BlockSpec((bb, Sl, Hp), lambda i: (i, 0, 0)),
        ),
        compiler_params=pltpu.CompilerParams(
            dimension_semantics=("parallel",),
            vmem_limit_bytes=max(16 << 20, int(attn_vmem) + (2 << 20)),
        ),
    )(q, kv, wc_t, bc)

    return out_padded[:, :, :H]


# --------------------------------------------------------------------------
# Pure-JAX f32 reference mirroring the PyTorch forward (no score scaling,
# matching the original module).
# --------------------------------------------------------------------------
def _reference(global_features, local_features, params):
    def linear(x, w, b):
        return jnp.einsum("bsh,oh->bso", x, w) + b

    keys = linear(global_features, params["wk"], params["bk"])
    queries = linear(local_features, params["wq"], params["bq"])
    values = linear(global_features, params["wv"], params["bv"])
    scores = jnp.einsum("bqh,bkh->bqk", queries, keys)
    weights = jax.nn.softmax(scores, axis=-1)
    context = jnp.einsum("bqk,bkh->bqh", weights, values)
    return linear(context, params["wc"], params["bc"])


def _init_params(key, hidden):
    bound = 1.0 / (hidden ** 0.5)
    keys = jax.random.split(key, 8)
    names = ["wk", "bk", "wq", "bq", "wv", "bv", "wc", "bc"]
    shapes = [(hidden, hidden), (hidden,)] * 4
    return {
        n: jax.random.uniform(k, s, jnp.float32, minval=-bound, maxval=bound)
        for n, k, s in zip(names, keys, shapes)
    }


if __name__ == "__main__":
    B, Sg, Sl, H = 2, 8, 8, 32

    root = jax.random.PRNGKey(0)
    k_params, k_g, k_l = jax.random.split(root, 3)

    params = _init_params(k_params, H)
    global_features = jax.random.normal(k_g, (B, Sg, H), jnp.float32)
    local_features = jax.random.normal(k_l, (B, Sl, H), jnp.float32)

    fn = jax.jit(custom_attention)
    out = fn(global_features, local_features, params)
    out = jax.block_until_ready(out)

    ref = _reference(global_features, local_features, params)
    assert out.shape == (B, Sl, H)
    # bf16 MXU operands with f32 accumulation -> loosened tolerance vs f32 reference.
    assert jnp.allclose(out, ref, atol=5e-2, rtol=5e-2), "mismatch vs reference"

    print("KERNEL_OK")
</pallas_src>

<mosaic_0001>
module attributes {stable_mosaic.version = 11 : i64} {
  func.func @_attn_kernel(%arg0: i32, %arg1: memref<2x8x128xbf16, #tpu.memory_space<vmem>>, %arg2: memref<2x8x256xbf16, #tpu.memory_space<vmem>>, %arg3: memref<128x128xbf16, #tpu.memory_space<vmem>>, %arg4: memref<1x128xf32, #tpu.memory_space<vmem>>, %arg5: memref<2x8x128xf32, #tpu.memory_space<vmem>>) attributes {dimension_semantics = [#tpu.dimension_semantics<parallel>], iteration_bounds = array<i64: 1>, scalar_prefetch = 0 : i64, scratch_operands = 0 : i64, tpu.core_type = #tpu.core_type<tc>, window_params = [{transform_indices = @transform_0, window_bounds = array<i64: 2, 8, 128>}, {transform_indices = @transform_1, window_bounds = array<i64: 2, 8, 256>}, {pipeline_mode = #tpu.pipeline_mode<synchronous>, transform_indices = @transform_2, window_bounds = array<i64: 128, 128>}, {pipeline_mode = #tpu.pipeline_mode<synchronous>, transform_indices = @transform_3, window_bounds = array<i64: 1, 128>}, {transform_indices = @transform_4, window_bounds = array<i64: 2, 8, 128>}]} {
    %c0 = arith.constant 0 : index
    %c0_0 = arith.constant 0 : index
    %c0_1 = arith.constant 0 : index
    %0 = vector.load %arg1[%c0, %c0_0, %c0_1] : memref<2x8x128xbf16, #tpu.memory_space<vmem>>, vector<2x8x128xbf16>
    %c0_2 = arith.constant 0 : index
    %c0_3 = arith.constant 0 : index
    %c0_4 = arith.constant 0 : index
    %1 = vector.load %arg2[%c0_2, %c0_3, %c0_4] : memref<2x8x256xbf16, #tpu.memory_space<vmem>>, vector<2x8x128xbf16>
    %c0_5 = arith.constant 0 : index
    %c0_6 = arith.constant 0 : index
    %c128 = arith.constant 128 : index
    %2 = vector.load %arg2[%c0_5, %c0_6, %c128] : memref<2x8x256xbf16, #tpu.memory_space<vmem>>, vector<2x8x128xbf16>
    "tpu.trace_start"() <{level = 10 : i32, message = "bqh,bkh->bqk"}> : () -> ()
    %cst = arith.constant dense<0.000000e+00> : vector<2x8x8xf32>
    %3 = tpu.matmul %0, %1, %cst {dimension_numbers = #tpu.dot_dimension_numbers<[2], [2], [1], [1], [0, 0, 0, 1, 1, 1], [0], [0]>} : vector<2x8x128xbf16>, vector<2x8x128xbf16>, vector<2x8x8xf32> -> vector<2x8x8xf32>
    "tpu.trace_stop"() : () -> ()
    %cst_7 = arith.constant dense<0xFF800000> : vector<2x8xf32>
    %4 = vector.multi_reduction <maximumf>, %3, %cst_7 [2] : vector<2x8x8xf32> to vector<2x8xf32>
    %5 = vector.shape_cast %4 : vector<2x8xf32> to vector<2x8x1xf32>
    %6 = vector.broadcast %5 : vector<2x8x1xf32> to vector<2x8x8xf32>
    %7 = arith.subf %3, %6 : vector<2x8x8xf32>
    %8 = math.exp %7 : vector<2x8x8xf32>
    %cst_8 = arith.constant dense<0.000000e+00> : vector<2x8xf32>
    %9 = vector.multi_reduction <add>, %8, %cst_8 [2] : vector<2x8x8xf32> to vector<2x8xf32>
    %10 = vector.shape_cast %9 : vector<2x8xf32> to vector<2x8x1xf32>
    %11 = arith.truncf %8 : vector<2x8x8xf32> to vector<2x8x8xbf16>
    "tpu.trace_start"() <{level = 10 : i32, message = "bqk,bkh->bqh"}> : () -> ()
    %cst_9 = arith.constant dense<0.000000e+00> : vector<2x8x128xf32>
    %12 = tpu.matmul %11, %2, %cst_9 {dimension_numbers = #tpu.dot_dimension_numbers<[2], [1], [1], [2], [0, 0, 0, 1, 1, 2], [0], [0]>} : vector<2x8x8xbf16>, vector<2x8x128xbf16>, vector<2x8x128xf32> -> vector<2x8x128xf32>
    "tpu.trace_stop"() : () -> ()
    %13 = tpu.reciprocal %10 {approx = true} : vector<2x8x1xf32> -> vector<2x8x1xf32>
    %14 = vector.broadcast %13 : vector<2x8x1xf32> to vector<2x8x128xf32>
    %15 = arith.mulf %12, %14 : vector<2x8x128xf32>
    %16 = arith.truncf %15 : vector<2x8x128xf32> to vector<2x8x128xbf16>
    %c0_10 = arith.constant 0 : index
    %c0_11 = arith.constant 0 : index
    %17 = vector.load %arg3[%c0_10, %c0_11] : memref<128x128xbf16, #tpu.memory_space<vmem>>, vector<128x128xbf16>
    "tpu.trace_start"() <{level = 10 : i32, message = "bqh,ho->bqo"}> : () -> ()
    %cst_12 = arith.constant dense<0.000000e+00> : vector<2x8x128xf32>
    %18 = tpu.matmul %16, %17, %cst_12 {dimension_numbers = #tpu.dot_dimension_numbers<[2], [0], [0, 1], [1], [0, 0, 0, 1, 1, 1], [], []>} : vector<2x8x128xbf16>, vector<128x128xbf16>, vector<2x8x128xf32> -> vector<2x8x128xf32>
    "tpu.trace_stop"() : () -> ()
    %c0_13 = arith.constant 0 : index
    %c0_14 = arith.constant 0 : index
    %19 = vector.load %arg4[%c0_13, %c0_14] : memref<1x128xf32, #tpu.memory_space<vmem>>, vector<1x128xf32>
    %20 = vector.shape_cast %19 : vector<1x128xf32> to vector<1x1x128xf32>
    %21 = vector.broadcast %20 : vector<1x1x128xf32> to vector<2x8x128xf32>
    %22 = arith.addf %18, %21 : vector<2x8x128xf32>
    %c0_15 = arith.constant 0 : index
    %c0_16 = arith.constant 0 : index
    %c0_17 = arith.constant 0 : index
    %23 = vector.load %arg5[%c0_15, %c0_16, %c0_17] : memref<2x8x128xf32, #tpu.memory_space<vmem>>, vector<2x8x128xf32>
    tpu.vector_store %arg5[%c0_15, %c0_16, %c0_17], %22 {strides = array<i32>} : memref<2x8x128xf32, #tpu.memory_space<vmem>>, vector<2x8x128xf32>,
    return
  }
  func.func @transform_0(%arg0: i32) -> (i32, i32, i32) {
    %c0_i32 = arith.constant 0 : i32
    %c0_i32_0 = arith.constant 0 : i32
    %c0_i32_1 = arith.constant 0 : i32
    return %arg0, %c0_i32, %c0_i32_0 : i32, i32, i32
  }
  func.func @transform_1(%arg0: i32) -> (i32, i32, i32) {
    %c0_i32 = arith.constant 0 : i32
    %c0_i32_0 = arith.constant 0 : i32
    %c0_i32_1 = arith.constant 0 : i32
    return %arg0, %c0_i32, %c0_i32_0 : i32, i32, i32
  }
  func.func @transform_2(%arg0: i32) -> (i32, i32) {
    %c0_i32 = arith.constant 0 : i32
    %c0_i32_0 = arith.constant 0 : i32
    %c0_i32_1 = arith.constant 0 : i32
    return %c0_i32, %c0_i32_0 : i32, i32
  }
  func.func @transform_3(%arg0: i32) -> (i32, i32) {
    %c0_i32 = arith.constant 0 : i32
    %c0_i32_0 = arith.constant 0 : i32
    %c0_i32_1 = arith.constant 0 : i32
    return %c0_i32, %c0_i32_0 : i32, i32
  }
  func.func @transform_4(%arg0: i32) -> (i32, i32, i32) {
    %c0_i32 = arith.constant 0 : i32
    %c0_i32_0 = arith.constant 0 : i32
    %c0_i32_1 = arith.constant 0 : i32
    return %arg0, %c0_i32, %c0_i32_0 : i32, i32, i32
  }
}

module attributes {stable_mosaic.version = 11 : i64} {
  func.func @_proj_kernel(%arg0: i32, %arg1: memref<16x128xbf16, #tpu.memory_space<vmem>>, %arg2: memref<16x128xbf16, #tpu.memory_space<vmem>>, %arg3: memref<128x256xbf16, #tpu.memory_space<vmem>>, %arg4: memref<1x256xf32, #tpu.memory_space<vmem>>, %arg5: memref<128x128xbf16, #tpu.memory_space<vmem>>, %arg6: memref<1x128xf32, #tpu.memory_space<vmem>>, %arg7: memref<16x256xbf16, #tpu.memory_space<vmem>>, %arg8: memref<16x128xbf16, #tpu.memory_space<vmem>>) attributes {dimension_semantics = [#tpu.dimension_semantics<arbitrary>], iteration_bounds = array<i64: 1>, scalar_prefetch = 0 : i64, scratch_operands = 0 : i64, tpu.core_type = #tpu.core_type<tc>, window_params = [{pipeline_mode = #tpu.pipeline_mode<synchronous>, transform_indices = @transform_0, window_bounds = array<i64: 16, 128>}, {pipeline_mode = #tpu.pipeline_mode<synchronous>, transform_indices = @transform_1, window_bounds = array<i64: 16, 128>}, {pipeline_mode = #tpu.pipeline_mode<synchronous>, transform_indices = @transform_2, window_bounds = array<i64: 128, 256>}, {pipeline_mode = #tpu.pipeline_mode<synchronous>, transform_indices = @transform_3, window_bounds = array<i64: 1, 256>}, {pipeline_mode = #tpu.pipeline_mode<synchronous>, transform_indices = @transform_4, window_bounds = array<i64: 128, 128>}, {pipeline_mode = #tpu.pipeline_mode<synchronous>, transform_indices = @transform_5, window_bounds = array<i64: 1, 128>}, {pipeline_mode = #tpu.pipeline_mode<synchronous>, transform_indices = @transform_6, window_bounds = array<i64: 16, 256>}, {pipeline_mode = #tpu.pipeline_mode<synchronous>, transform_indices = @transform_7, window_bounds = array<i64: 16, 128>}]} {
    %c0 = arith.constant 0 : index
    %c0_0 = arith.constant 0 : index
    %0 = vector.load %arg1[%c0, %c0_0] : memref<16x128xbf16, #tpu.memory_space<vmem>>, vector<16x128xbf16>
    %c0_1 = arith.constant 0 : index
    %c0_2 = arith.constant 0 : index
    %1 = vector.load %arg3[%c0_1, %c0_2] : memref<128x256xbf16, #tpu.memory_space<vmem>>, vector<128x256xbf16>
    %cst = arith.constant dense<0.000000e+00> : vector<16x256xf32>
    %2 = tpu.matmul %0, %1, %cst {dimension_numbers = #tpu.dot_dimension_numbers<[1], [0], [0], [1], [0, 0, 1, 1], [], []>} : vector<16x128xbf16>, vector<128x256xbf16>, vector<16x256xf32> -> vector<16x256xf32>
    %c0_3 = arith.constant 0 : index
    %c0_4 = arith.constant 0 : index
    %3 = vector.load %arg4[%c0_3, %c0_4] : memref<1x256xf32, #tpu.memory_space<vmem>>, vector<1x256xf32>
    %4 = vector.broadcast %3 : vector<1x256xf32> to vector<16x256xf32>
    %5 = arith.addf %2, %4 : vector<16x256xf32>
    %6 = arith.truncf %5 : vector<16x256xf32> to vector<16x256xbf16>
    %c0_5 = arith.constant 0 : index
    %c0_6 = arith.constant 0 : index
    %7 = vector.load %arg7[%c0_5, %c0_6] : memref<16x256xbf16, #tpu.memory_space<vmem>>, vector<16x256xbf16>
    tpu.vector_store %arg7[%c0_5, %c0_6], %6 {strides = array<i32>} : memref<16x256xbf16, #tpu.memory_space<vmem>>, vector<16x256xbf16>,
    %c0_7 = arith.constant 0 : index
    %c0_8 = arith.constant 0 : index
    %8 = vector.load %arg2[%c0_7, %c0_8] : memref<16x128xbf16, #tpu.memory_space<vmem>>, vector<16x128xbf16>
    %c0_9 = arith.constant 0 : index
    %c0_10 = arith.constant 0 : index
    %9 = vector.load %arg5[%c0_9, %c0_10] : memref<128x128xbf16, #tpu.memory_space<vmem>>, vector<128x128xbf16>
    %cst_11 = arith.constant dense<0.000000e+00> : vector<16x128xf32>
    %10 = tpu.matmul %8, %9, %cst_11 {dimension_numbers = #tpu.dot_dimension_numbers<[1], [0], [0], [1], [0, 0, 1, 1], [], []>} : vector<16x128xbf16>, vector<128x128xbf16>, vector<16x128xf32> -> vector<16x128xf32>
    %c0_12 = arith.constant 0 : index
    %c0_13 = arith.constant 0 : index
    %11 = vector.load %arg6[%c0_12, %c0_13] : memref<1x128xf32, #tpu.memory_space<vmem>>, vector<1x128xf32>
    %12 = vector.broadcast %11 : vector<1x128xf32> to vector<16x128xf32>
    %13 = arith.addf %10, %12 : vector<16x128xf32>
    %14 = arith.truncf %13 : vector<16x128xf32> to vector<16x128xbf16>
    %c0_14 = arith.constant 0 : index
    %c0_15 = arith.constant 0 : index
    %15 = vector.load %arg8[%c0_14, %c0_15] : memref<16x128xbf16, #tpu.memory_space<vmem>>, vector<16x128xbf16>
    tpu.vector_store %arg8[%c0_14, %c0_15], %14 {strides = array<i32>} : memref<16x128xbf16, #tpu.memory_space<vmem>>, vector<16x128xbf16>,
    return
  }
  func.func @transform_0(%arg0: i32) -> (i32, i32) {
    %c0_i32 = arith.constant 0 : i32
    %c0_i32_0 = arith.constant 0 : i32
    %c0_i32_1 = arith.constant 0 : i32
    return %c0_i32, %c0_i32_0 : i32, i32
  }
  func.func @transform_1(%arg0: i32) -> (i32, i32) {
    %c0_i32 = arith.constant 0 : i32
    %c0_i32_0 = arith.constant 0 : i32
    %c0_i32_1 = arith.constant 0 : i32
    return %c0_i32, %c0_i32_0 : i32, i32
  }
  func.func @transform_2(%arg0: i32) -> (i32, i32) {
    %c0_i32 = arith.constant 0 : i32
    %c0_i32_0 = arith.constant 0 : i32
    %c0_i32_1 = arith.constant 0 : i32
    return %c0_i32, %c0_i32_0 : i32, i32
  }
  func.func @transform_3(%arg0: i32) -> (i32, i32) {
    %c0_i32 = arith.constant 0 : i32
    %c0_i32_0 = arith.constant 0 : i32
    %c0_i32_1 = arith.constant 0 : i32
    return %c0_i32, %c0_i32_0 : i32, i32
  }
  func.func @transform_4(%arg0: i32) -> (i32, i32) {
    %c0_i32 = arith.constant 0 : i32
    %c0_i32_0 = arith.constant 0 : i32
    %c0_i32_1 = arith.constant 0 : i32
    return %c0_i32, %c0_i32_0 : i32, i32
  }
  func.func @transform_5(%arg0: i32) -> (i32, i32) {
    %c0_i32 = arith.constant 0 : i32
    %c0_i32_0 = arith.constant 0 : i32
    %c0_i32_1 = arith.constant 0 : i32
    return %c0_i32, %c0_i32_0 : i32, i32
  }
  func.func @transform_6(%arg0: i32) -> (i32, i32) {
    %c0_i32 = arith.constant 0 : i32
    %c0_i32_0 = arith.constant 0 : i32
    %c0_i32_1 = arith.constant 0 : i32
    return %c0_i32, %c0_i32_0 : i32, i32
  }
  func.func @transform_7(%arg0: i32) -> (i32, i32) {
    %c0_i32 = arith.constant 0 : i32
    %c0_i32_0 = arith.constant 0 : i32
    %c0_i32_1 = arith.constant 0 : i32
    return %c0_i32, %c0_i32_0 : i32, i32
  }
}

</mosaic_0001>

<llo_original>
// kernel: custom_attention.3
$region0: #{custom_attention.3}
  #allocation0 [shape = 'u32[]', space=smem, size = 0x4, offset = 0x4, fixed_abs, tag = 'smem constant byte address 0x4 - core index']
  #allocation1 [shape = 'u32[144,128]{1,0:T(1,128)}', space=vmem, size = 0x12000, scoped, tag = 'internal scratch']
  %s0 = inlined_call_operand.vmem [shape: bf16[2,8,128], index: 0, kind: input, shape index: {}]
  %s1 = inlined_call_operand.vmem [shape: bf16[2,8,256], index: 1, kind: input, shape index: {}]
  %s2 = inlined_call_operand.vmem [shape: bf16[128,128], index: 2, kind: input, shape index: {}]
  %s3 = inlined_call_operand.vmem [shape: f32[1,128], index: 3, kind: input, shape index: {}]
  %s4 = inlined_call_operand.hbm [shape: f32[2,8,128], index: 4, kind: output, shape index: {}]
  %s5 = sld [smem:[#allocation0]]
  $region26: #{custom_attention.3} parent=0
    _
  %s7 = ssub.s32 1, %s5
  %s8 = scalar_select 0, %s7, %s5
  $region1: #{custom_attention.3} parent=0
    #allocation2 [shape = 'u8[8192]{0}', space=vmem, size = 0x2000, scoped, tag = 'output window, operand 0, single buffered']
    #allocation3 [shape = 's32[1]{0}', space=sflag, size = 0x4, scoped, tag = 'scoped memory for custom_attention.3']
    %9 = vsyncpa [#allocation3], 0
    // Predicated region
    $region2: #{custom_attention.3} parent=1 // pred_check
      _
    $region3: #{custom_attention.3} parent=1 // pred_check_branch
      %11 = sbr.rel (0) target = $region5
    $region4: #{custom_attention.3} parent=1 // pred_region
      _
    $region5: #{custom_attention.3} parent=1 // pred_fallthru
      _
    // Predicated region
    $region6: #{custom_attention.3} parent=1 // pred_check
      _
    $region7: #{custom_attention.3} parent=1 // pred_check_branch
      %13 = sbr.rel (0) target = $region9
    $region8: #{custom_attention.3} parent=1 // pred_region
      _
    $region9: #{custom_attention.3} parent=1 // pred_fallthru
      _
    // Predicated region
    $region10: #{custom_attention.3} parent=1 // pred_check
      _
    $region11: #{custom_attention.3} parent=1 // pred_check_branch
      %15 = sbr.rel (0) target = $region13
    $region12: #{custom_attention.3} parent=1 // pred_region
      _
    $region13: #{custom_attention.3} parent=1 // pred_fallthru
      _
    // Predicated region
    $region14: #{custom_attention.3} parent=1 // pred_check
      _
    $region15: #{custom_attention.3} parent=1 // pred_check_branch
      %17 = sbr.rel (0) target = $region17
    $region16: #{custom_attention.3} parent=1 // pred_region
      _
    $region17: #{custom_attention.3} parent=1 // pred_fallthru
      _
    %v19 = vld [vmem:[%s0] sm:$0xf]
    %v20 = vld [vmem:[%s0 + $0x4] sm:$0xf]
    %v21 = vld [vmem:[%s1] sm:$0xf]
    %v22 = vld [vmem:[%s1 + $0x8] sm:$0xf]
    %v23 = vld [vmem:[%s1 + $0x4] sm:$0xf]
    %v24 = vld [vmem:[%s1 + $0xc] sm:$0xf]
    %25 = vmatprep.subr.bf16.mxu0 0
    %26 = vmatpush1.bf16.xpose.msra.mxu0 0
    %27 = vmatprep.subr.bf16.mxu0 0
    %28 = vmatpush1.bf16.xpose.msra.mxu0 0
    %29 = vmatprep.subr.bf16.mxu0 0
    %30 = vmatpush1.bf16.xpose.msra.mxu0 0
    %31 = vmatprep.subr.bf16.mxu0 0
    %32 = vmatpush1.bf16.xpose.msra.mxu0 0
    %33 = vmatprep.subr.bf16.mxu0 0
    %34 = vmatpush1.bf16.xpose.msra.mxu0 0
    %35 = vmatprep.subr.bf16.mxu0 0
    %36 = vmatpush1.bf16.xpose.msra.mxu0 0
    %37 = vmatprep.subr.bf16.mxu0 0
    %38 = vmatpush1.bf16.xpose.msra.mxu0 0
    %39 = vmatprep.subr.bf16.mxu0 0
    %40 = vmatpush1.bf16.xpose.msra.mxu0 %v21
    %41 = vmatprep.subr.bf16.mxu0 0
    %42 = vmatpush2.bf16.xpose.msra.mxu0 0
    %43 = vmatprep.subr.bf16.mxu0 0
    %44 = vmatpush2.bf16.xpose.msra.mxu0 0
    %45 = vmatprep.subr.bf16.mxu0 0
    %46 = vmatpush2.bf16.xpose.msra.mxu0 0
    %47 = vmatprep.subr.bf16.mxu0 0
    %48 = vmatpush2.bf16.xpose.msra.mxu0 0
    %49 = vmatprep.subr.bf16.mxu0 0
    %50 = vmatpush2.bf16.xpose.msra.mxu0 0
    %51 = vmatprep.subr.bf16.mxu0 0
    %52 = vmatpush2.bf16.xpose.msra.mxu0 0
    %53 = vmatprep.subr.bf16.mxu0 0
    %54 = vmatpush2.bf16.xpose.msra.mxu0 0
    %55 = vmatprep.subr.bf16.mxu0 0
    %56 = vmatpush2.bf16.xpose.msra.mxu0 0
    %57 = vmatprep.mubr.bf16.mxu0 0
    %58 = vmatmul.mubr.bf16.gmra.mxu0 %v19
    %v59 = vpop.f32.mrf.mxu0
    %v60 = vadd.f32 0.0, %v59
    %v61 = vpop.f32.mrf.mxu0
    %v62 = vpop.f32.mrf.mxu0
    %v63 = vpop.f32.mrf.mxu0
    %64 = vdwg.mxu0
    %65 = vmatprep.subr.bf16.mxu0 0
    %66 = vmatpush1.bf16.xpose.msra.mxu0 0
    %67 = vmatprep.subr.bf16.mxu0 0
    %68 = vmatpush1.bf16.xpose.msra.mxu0 0
    %69 = vmatprep.subr.bf16.mxu0 0
    %70 = vmatpush1.bf16.xpose.msra.mxu0 0
    %71 = vmatprep.subr.bf16.mxu0 0
    %72 = vmatpush1.bf16.xpose.msra.mxu0 0
    %73 = vmatprep.subr.bf16.mxu0 0
    %74 = vmatpush1.bf16.xpose.msra.mxu0 0
    %75 = vmatprep.subr.bf16.mxu0 0
    %76 = vmatpush1.bf16.xpose.msra.mxu0 0
    %77 = vmatprep.subr.bf16.mxu0 0
    %78 = vmatpush1.bf16.xpose.msra.mxu0 0
    %79 = vmatprep.subr.bf16.mxu0 0
    %80 = vmatpush1.bf16.xpose.msra.mxu0 %v22
    %81 = vmatprep.subr.bf16.mxu0 0
    %82 = vmatpush2.bf16.xpose.msra.mxu0 0
    %83 = vmatprep.subr.bf16.mxu0 0
    %84 = vmatpush2.bf16.xpose.msra.mxu0 0
    %85 = vmatprep.subr.bf16.mxu0 0
    %86 = vmatpush2.bf16.xpose.msra.mxu0 0
    %87 = vmatprep.subr.bf16.mxu0 0
    %88 = vmatpush2.bf16.xpose.msra.mxu0 0
    %89 = vmatprep.subr.bf16.mxu0 0
    %90 = vmatpush2.bf16.xpose.msra.mxu0 0
    %91 = vmatprep.subr.bf16.mxu0 0
    %92 = vmatpush2.bf16.xpose.msra.mxu0 0
    %93 = vmatprep.subr.bf16.mxu0 0
    %94 = vmatpush2.bf16.xpose.msra.mxu0 0
    %95 = vmatprep.subr.bf16.mxu0 0
    %96 = vmatpush2.bf16.xpose.msra.mxu0 0
    %97 = vmatprep.mubr.bf16.mxu0 0
    %98 = vmatmul.mubr.bf16.gmra.mxu0 %v20
    %v99 = vpop.f32.mrf.mxu0
    %v100 = vadd.f32 0.0, %v99
    %v101 = vpop.f32.mrf.mxu0
    %v102 = vpop.f32.mrf.mxu0
    %v103 = vpop.f32.mrf.mxu0
    %104 = vdwg.mxu0
    %vm105 = vcmask 64512
    %v106 = vsel %vm105, %v60, -inf
    %107 = vmax.xlane.f32.xlu0 %v106
    %v108 = vpop.xlane.xlu0 %107
    %v109 = vsel %vm105, %v100, -inf
    %110 = vmax.xlane.f32.xlu0 %v109
    %v111 = vpop.xlane.xlu0 %110
    %v112 = vsub.f32 %v60, %v108
    %v113 = vsub.f32 %v100, %v111
    %v114 = vmul.f32 %v112, 1.442695
    %v115 = vpow.pop %v114
    %v116 = vmul.f32 %v113, 1.442695
    %v117 = vpow.pop %v116
    %v118 = vsel %vm105, %v115, 0.0
    %119 = vadd.xlane.f32.xlu0 %v118
    %v120 = vpop.xlane.xlu0 %119
    %v121 = vsel %vm105, %v117, 0.0
    %122 = vadd.xlane.f32.xlu0 %v121
    %v123 = vpop.xlane.xlu0 %122
    %v124 = vpack.c.bf16 %v115, %v115
    %v125 = vpack.c.bf16 %v117, %v117
    %v127 = vsel %vm105, %v124, 0
    %vm129 = vcmask 1043456
    %v131 = vsel %vm129, %v23, 0
    %133 = vmatprep.subr.bf16.mxu0 0
    %134 = vmatpush1.bf16.msra.mxu0 0
    %135 = vmatprep.subr.bf16.mxu0 0
    %136 = vmatpush1.bf16.msra.mxu0 0
    %137 = vmatprep.subr.bf16.mxu0 0
    %138 = vmatpush1.bf16.msra.mxu0 0
    %139 = vmatprep.subr.bf16.mxu0 0
    %140 = vmatpush1.bf16.msra.mxu0 0
    %141 = vmatprep.subr.bf16.mxu0 0
    %142 = vmatpush1.bf16.msra.mxu0 0
    %143 = vmatprep.subr.bf16.mxu0 0
    %144 = vmatpush1.bf16.msra.mxu0 0
    %145 = vmatprep.subr.bf16.mxu0 0
    %146 = vmatpush1.bf16.msra.mxu0 0
    %147 = vmatprep.subr.bf16.mxu0 0
    %148 = vmatpush1.bf16.msra.mxu0 %v131
    %149 = vmatprep.subr.bf16.mxu0 0
    %150 = vmatpush2.bf16.msra.mxu0 0
    %151 = vmatprep.subr.bf16.mxu0 0
    %152 = vmatpush2.bf16.msra.mxu0 0
    %153 = vmatprep.subr.bf16.mxu0 0
    %154 = vmatpush2.bf16.msra.mxu0 0
    %155 = vmatprep.subr.bf16.mxu0 0
    %156 = vmatpush2.bf16.msra.mxu0 0
    %157 = vmatprep.subr.bf16.mxu0 0
    %158 = vmatpush2.bf16.msra.mxu0 0
    %159 = vmatprep.subr.bf16.mxu0 0
    %160 = vmatpush2.bf16.msra.mxu0 0
    %161 = vmatprep.subr.bf16.mxu0 0
    %162 = vmatpush2.bf16.msra.mxu0 0
    %163 = vmatprep.subr.bf16.mxu0 0
    %164 = vmatpush2.bf16.msra.mxu0 0
    %165 = vmatprep.mubr.bf16.mxu0 0
    %166 = vmatmul.mubr.bf16.gmra.mxu0 %v127
    %v167 = vpop.f32.mrf.mxu0
    %v168 = vadd.f32 0.0, %v167
    %v169 = vpop.f32.mrf.mxu0
    %v170 = vpop.f32.mrf.mxu0
    %v171 = vpop.f32.mrf.mxu0
    %172 = vdwg.mxu0
    %v174 = vsel %vm105, %v125, 0
    %v177 = vsel %vm129, %v24, 0
    %179 = vmatprep.subr.bf16.mxu0 0
    %180 = vmatpush1.bf16.msra.mxu0 0
    %181 = vmatprep.subr.bf16.mxu0 0
    %182 = vmatpush1.bf16.msra.mxu0 0
    %183 = vmatprep.subr.bf16.mxu0 0
    %184 = vmatpush1.bf16.msra.mxu0 0
    %185 = vmatprep.subr.bf16.mxu0 0
    %186 = vmatpush1.bf16.msra.mxu0 0
    %187 = vmatprep.subr.bf16.mxu0 0
    %188 = vmatpush1.bf16.msra.mxu0 0
    %189 = vmatprep.subr.bf16.mxu0 0
    %190 = vmatpush1.bf16.msra.mxu0 0
    %191 = vmatprep.subr.bf16.mxu0 0
    %192 = vmatpush1.bf16.msra.mxu0 0
    %193 = vmatprep.subr.bf16.mxu0 0
    %194 = vmatpush1.bf16.msra.mxu0 %v177
    %195 = vmatprep.subr.bf16.mxu0 0
    %196 = vmatpush2.bf16.msra.mxu0 0
    %197 = vmatprep.subr.bf16.mxu0 0
    %198 = vmatpush2.bf16.msra.mxu0 0
    %199 = vmatprep.subr.bf16.mxu0 0
    %200 = vmatpush2.bf16.msra.mxu0 0
    %201 = vmatprep.subr.bf16.mxu0 0
    %202 = vmatpush2.bf16.msra.mxu0 0
    %203 = vmatprep.subr.bf16.mxu0 0
    %204 = vmatpush2.bf16.msra.mxu0 0
    %205 = vmatprep.subr.bf16.mxu0 0
    %206 = vmatpush2.bf16.msra.mxu0 0
    %207 = vmatprep.subr.bf16.mxu0 0
    %208 = vmatpush2.bf16.msra.mxu0 0
    %209 = vmatprep.subr.bf16.mxu0 0
    %210 = vmatpush2.bf16.msra.mxu0 0
    %211 = vmatprep.mubr.bf16.mxu0 0
    %212 = vmatmul.mubr.bf16.gmra.mxu0 %v174
    %v213 = vpop.f32.mrf.mxu0
    %v214 = vadd.f32 0.0, %v213
    %v215 = vpop.f32.mrf.mxu0
    %v216 = vpop.f32.mrf.mxu0
    %v217 = vpop.f32.mrf.mxu0
    %218 = vdwg.mxu0
    %v219 = vrcp.pop %v120
    %v220 = vrcp.pop %v123
    %v221 = vmul.f32 %v168, %v219
    %v222 = vmul.f32 %v214, %v220
    %v223 = vpack.c.bf16 %v221, %v221
    %v224 = vpack.c.bf16 %v222, %v222
    %v225 = vld [vmem:[%s2] sm:$0xf]
    %v226 = vld [vmem:[%s2 + $0x4] sm:$0xf]
    %v227 = vld [vmem:[%s2 + $0x8] sm:$0xf]
    %v228 = vld [vmem:[%s2 + $0xc] sm:$0xf]
    %v229 = vld [vmem:[%s2 + $0x10] sm:$0xf]
    %v230 = vld [vmem:[%s2 + $0x14] sm:$0xf]
    %v231 = vld [vmem:[%s2 + $0x18] sm:$0xf]
    %v232 = vld [vmem:[%s2 + $0x1c] sm:$0xf]
    %v233 = vld [vmem:[%s2 + $0x20] sm:$0xf]
    %v234 = vld [vmem:[%s2 + $0x24] sm:$0xf]
    %v235 = vld [vmem:[%s2 + $0x28] sm:$0xf]
    %v236 = vld [vmem:[%s2 + $0x2c] sm:$0xf]
    %v237 = vld [vmem:[%s2 + $0x30] sm:$0xf]
    %v238 = vld [vmem:[%s2 + $0x34] sm:$0xf]
    %v239 = vld [vmem:[%s2 + $0x38] sm:$0xf]
    %v240 = vld [vmem:[%s2 + $0x3c] sm:$0xf]
    %v241 = vld [vmem:[%s3] sm:$0x1]
    %v243 = vlaneseq
    %v244 = vshrl.u32 %v243, 7
    %v245 = vsub.s32 0, %v244
    %v246 = vrot.slane %v241, %v245
    %v250 = vunpack.c.l.b16 %v223
    %v251 = vunpack.c.l.b16 %v224
    %v252 = vpack.c.b16 %v251, %v250
    %v270 = vunpack.c.l.b16 %v225
    %v271 = vunpack.c.l.b16 %v226
    %v272 = vunpack.c.l.b16 %v227
    %v273 = vunpack.c.l.b16 %v228
    %v274 = vunpack.c.l.b16 %v229
    %v275 = vunpack.c.l.b16 %v230
    %v276 = vunpack.c.l.b16 %v231
    %v277 = vunpack.c.l.b16 %v232
    %v278 = vunpack.c.l.b16 %v233
    %v279 = vunpack.c.l.b16 %v234
    %v280 = vunpack.c.l.b16 %v235
    %v281 = vunpack.c.l.b16 %v236
    %v282 = vunpack.c.l.b16 %v237
    %v283 = vunpack.c.l.b16 %v238
    %v284 = vunpack.c.l.b16 %v239
    %v285 = vunpack.c.l.b16 %v240
    %v286 = vpack.c.b16 %v271, %v270
    %v287 = vpack.c.b16 %v273, %v272
    %v288 = vpack.c.b16 %v275, %v274
    %v289 = vpack.c.b16 %v277, %v276
    %v290 = vpack.c.b16 %v279, %v278
    %v291 = vpack.c.b16 %v281, %v280
    %v292 = vpack.c.b16 %v283, %v282
    %v293 = vpack.c.b16 %v285, %v284
    %302 = vmatprep.subr.bf16.mxu0 0
    %303 = vmatpush1.bf16.msra.mxu0 %v293
    %304 = vmatprep.subr.bf16.mxu0 0
    %305 = vmatpush1.bf16.msra.mxu0 %v292
    %306 = vmatprep.subr.bf16.mxu0 0
    %307 = vmatpush1.bf16.msra.mxu0 %v291
    %308 = vmatprep.subr.bf16.mxu0 0
    %309 = vmatpush1.bf16.msra.mxu0 %v290
    %310 = vmatprep.subr.bf16.mxu0 0
    %311 = vmatpush1.bf16.msra.mxu0 %v289
    %312 = vmatprep.subr.bf16.mxu0 0
    %313 = vmatpush1.bf16.msra.mxu0 %v288
    %314 = vmatprep.subr.bf16.mxu0 0
    %315 = vmatpush1.bf16.msra.mxu0 %v287
    %316 = vmatprep.subr.bf16.mxu0 0
    %317 = vmatpush1.bf16.msra.mxu0 %v286
    %318 = vmatprep.subr.bf16.mxu0 0
    %319 = vmatpush2.bf16.msra.mxu0 0
    %320 = vmatprep.subr.bf16.mxu0 0
    %321 = vmatpush2.bf16.msra.mxu0 0
    %322 = vmatprep.subr.bf16.mxu0 0
    %323 = vmatpush2.bf16.msra.mxu0 0
    %324 = vmatprep.subr.bf16.mxu0 0
    %325 = vmatpush2.bf16.msra.mxu0 0
    %326 = vmatprep.subr.bf16.mxu0 0
    %327 = vmatpush2.bf16.msra.mxu0 0
    %328 = vmatprep.subr.bf16.mxu0 0
    %329 = vmatpush2.bf16.msra.mxu0 0
    %330 = vmatprep.subr.bf16.mxu0 0
    %331 = vmatpush2.bf16.msra.mxu0 0
    %332 = vmatprep.subr.bf16.mxu0 0
    %333 = vmatpush2.bf16.msra.mxu0 0
    %334 = vmatprep.mubr.bf16.mxu0 0
    %335 = vmatmul.mubr.bf16.gmra.mxu0 %v252
    %v336 = vpop.f32.mrf.mxu0
    %v337 = vadd.f32 %v246, %v336
    %v338 = vpop.f32.mrf.mxu0
    %v339 = vpop.f32.mrf.mxu0
    %v340 = vadd.f32 %v246, %v339
    %v341 = vpop.f32.mrf.mxu0
    %342 = vdwg.mxu0
    %343 = vst [vmem:[#allocation2] sm:$0xff] %v337
    %344 = vst [vmem:[#allocation2 + $0x8] sm:$0xff] %v340
    // Predicated region
    $region18: #{custom_attention.3} parent=1 // pred_check
      _
    $region19: #{custom_attention.3} parent=1 // pred_check_branch
      %346 = sbr.rel (0) target = $region21
    $region20: #{custom_attention.3} parent=1 // pred_region
      %s348 = ssub.s32 256, 256
      %349 = vsyncadd [#allocation3], %s348
      %s350 = sshll.u32 [#allocation2], 4
      %s351 = int_to_ptr.vmem [resolvable:$true] %s350
      %356 = dma.vmem_to_hbm [thread:$0]  %s351, 256, %s4, [#allocation3], 128, 128, 8
    $region21: #{custom_attention.3} parent=1 // pred_fallthru
      _
    // Predicated region
    $region22: #{custom_attention.3} parent=1 // pred_check
      _
    $region23: #{custom_attention.3} parent=1 // pred_check_branch
      %358 = sbr.rel (0) target = $region25
    $region24: #{custom_attention.3} parent=1 // pred_region
      %359 = dma.done [#allocation3], 256
    $region25: #{custom_attention.3} parent=1 // pred_fallthru
      _
    %360 = vsyncpa [#allocation3], 1

// kernel: custom_attention.2
$region0: #{custom_attention.2}
  #allocation0 [shape = 'u32[]', space=smem, size = 0x4, offset = 0x4, fixed_abs, tag = 'smem constant byte address 0x4 - core index']
  #allocation1 [shape = 'u32[144,128]{1,0:T(1,128)}', space=vmem, size = 0x12000, scoped, tag = 'internal scratch']
  %s0 = inlined_call_operand.vmem [shape: bf16[16,128], index: 0, kind: input, shape index: {}]
  %s1 = inlined_call_operand.vmem [shape: bf16[16,128], index: 1, kind: input, shape index: {}]
  %s2 = inlined_call_operand.vmem [shape: bf16[128,256], index: 2, kind: input, shape index: {}]
  %s3 = inlined_call_operand.vmem [shape: f32[1,256], index: 3, kind: input, shape index: {}]
  %s4 = inlined_call_operand.vmem [shape: bf16[128,128], index: 4, kind: input, shape index: {}]
  %s5 = inlined_call_operand.vmem [shape: f32[1,128], index: 5, kind: input, shape index: {}]
  %s6 = inlined_call_operand.vmem [shape: bf16[16,256], index: 6, kind: output, shape index: {0}]
  %s7 = inlined_call_operand.vmem [shape: bf16[16,128], index: 7, kind: output, shape index: {1}]
  %8 = xla_tuple %s6, %s7
  %s9 = sld [smem:[#allocation0]]
  $region42: #{custom_attention.2} parent=0
    _
  %s11 = ssub.s32 1, %s9
  %s12 = scalar_select 0, %s11, %s9
  // Predicated region
  $region2: #{custom_attention.2} parent=0 // pred_check
    _
  $region3: #{custom_attention.2} parent=0 // pred_check_branch
    %14 = sbr.rel (0) target = $region5
  $region4: #{custom_attention.2} parent=0 // pred_region
    _
  $region5: #{custom_attention.2} parent=0 // pred_fallthru
    _
  // Predicated region
  $region6: #{custom_attention.2} parent=0 // pred_check
    _
  $region7: #{custom_attention.2} parent=0 // pred_check_branch
    %16 = sbr.rel (0) target = $region9
  $region8: #{custom_attention.2} parent=0 // pred_region
    _
  $region9: #{custom_attention.2} parent=0 // pred_fallthru
    _
  // Predicated region
  $region10: #{custom_attention.2} parent=0 // pred_check
    _
  $region11: #{custom_attention.2} parent=0 // pred_check_branch
    %18 = sbr.rel (0) target = $region13
  $region12: #{custom_attention.2} parent=0 // pred_region
    _
  $region13: #{custom_attention.2} parent=0 // pred_fallthru
    _
  // Predicated region
  $region14: #{custom_attention.2} parent=0 // pred_check
    _
  $region15: #{custom_attention.2} parent=0 // pred_check_branch
    %20 = sbr.rel (0) target = $region17
  $region16: #{custom_attention.2} parent=0 // pred_region
    _
  $region17: #{custom_attention.2} parent=0 // pred_fallthru
    _
  // Predicated region
  $region18: #{custom_attention.2} parent=0 // pred_check
    _
  $region19: #{custom_attention.2} parent=0 // pred_check_branch
    %22 = sbr.rel (0) target = $region21
  $region20: #{custom_attention.2} parent=0 // pred_region
    _
  $region21: #{custom_attention.2} parent=0 // pred_fallthru
    _
  // Predicated region
  $region22: #{custom_attention.2} parent=0 // pred_check
    _
  $region23: #{custom_attention.2} parent=0 // pred_check_branch
    %24 = sbr.rel (0) target = $region25
  $region24: #{custom_attention.2} parent=0 // pred_region
    _
  $region25: #{custom_attention.2} parent=0 // pred_fallthru
    _
  %v26 = vld [vmem:[%s0] sm:$0xf]
  %v27 = vld [vmem:[%s0 + $0x4] sm:$0xf]
  %v28 = vld [vmem:[%s2] sm:$0xff]
  %v29 = vld [vmem:[%s2 + $0x8] sm:$0xff]
  %v30 = vld [vmem:[%s2 + $0x10] sm:$0xff]
  %v31 = vld [vmem:[%s2 + $0x18] sm:$0xff]
  %v32 = vld [vmem:[%s2 + $0x20] sm:$0xff]
  %v33 = vld [vmem:[%s2 + $0x28] sm:$0xff]
  %v34 = vld [vmem:[%s2 + $0x30] sm:$0xff]
  %v35 = vld [vmem:[%s2 + $0x38] sm:$0xff]
  %v36 = vld [vmem:[%s2 + $0x40] sm:$0xff]
  %v37 = vld [vmem:[%s2 + $0x48] sm:$0xff]
  %v38 = vld [vmem:[%s2 + $0x50] sm:$0xff]
  %v39 = vld [vmem:[%s2 + $0x58] sm:$0xff]
  %v40 = vld [vmem:[%s2 + $0x60] sm:$0xff]
  %v41 = vld [vmem:[%s2 + $0x68] sm:$0xff]
  %v42 = vld [vmem:[%s2 + $0x70] sm:$0xff]
  %v43 = vld [vmem:[%s2 + $0x78] sm:$0xff]
  %v44 = vld [vmem:[%s3] sm:$0x3]
  %v46 = vlaneseq
  %v47 = vshrl.u32 %v46, 7
  %v48 = vsub.s32 0, %v47
  %v49 = vrot.slane %v44, %v48
  %v50 = vlaneseq
  %v51 = vshrl.u32 %v50, 7
  %v52 = vsub.s32 1, %v51
  %v53 = vrot.slane %v44, %v52
  %v58 = vunpack.c.l.b16 %v26
  %v59 = vunpack.c.l.b16 %v27
  %v60 = vpack.c.b16 %v59, %v58
  %v78 = vunpack.c.l.b16 %v28
  %v79 = vunpack.c.h.b16 %v28
  %v80 = vunpack.c.l.b16 %v29
  %v81 = vunpack.c.h.b16 %v29
  %v82 = vunpack.c.l.b16 %v30
  %v83 = vunpack.c.h.b16 %v30
  %v84 = vunpack.c.l.b16 %v31
  %v85 = vunpack.c.h.b16 %v31
  %v86 = vunpack.c.l.b16 %v32
  %v87 = vunpack.c.h.b16 %v32
  %v88 = vunpack.c.l.b16 %v33
  %v89 = vunpack.c.h.b16 %v33
  %v90 = vunpack.c.l.b16 %v34
  %v91 = vunpack.c.h.b16 %v34
  %v92 = vunpack.c.l.b16 %v35
  %v93 = vunpack.c.h.b16 %v35
  %v94 = vunpack.c.l.b16 %v36
  %v95 = vunpack.c.h.b16 %v36
  %v96 = vunpack.c.l.b16 %v37
  %v97 = vunpack.c.h.b16 %v37
  %v98 = vunpack.c.l.b16 %v38
  %v99 = vunpack.c.h.b16 %v38
  %v100 = vunpack.c.l.b16 %v39
  %v101 = vunpack.c.h.b16 %v39
  %v102 = vunpack.c.l.b16 %v40
  %v103 = vunpack.c.h.b16 %v40
  %v104 = vunpack.c.l.b16 %v41
  %v105 = vunpack.c.h.b16 %v41
  %v106 = vunpack.c.l.b16 %v42
  %v107 = vunpack.c.h.b16 %v42
  %v108 = vunpack.c.l.b16 %v43
  %v109 = vunpack.c.h.b16 %v43
  %v110 = vpack.c.b16 %v80, %v78
  %v111 = vpack.c.b16 %v81, %v79
  %v112 = vpack.c.b16 %v84, %v82
  %v113 = vpack.c.b16 %v85, %v83
  %v114 = vpack.c.b16 %v88, %v86
  %v115 = vpack.c.b16 %v89, %v87
  %v116 = vpack.c.b16 %v92, %v90
  %v117 = vpack.c.b16 %v93, %v91
  %v118 = vpack.c.b16 %v96, %v94
  %v119 = vpack.c.b16 %v97, %v95
  %v120 = vpack.c.b16 %v100, %v98
  %v121 = vpack.c.b16 %v101, %v99
  %v122 = vpack.c.b16 %v104, %v102
  %v123 = vpack.c.b16 %v105, %v103
  %v124 = vpack.c.b16 %v108, %v106
  %v125 = vpack.c.b16 %v109, %v107
  %142 = vmatprep.subr.bf16.mxu0 %v125
  %143 = vmatpush1.bf16.msra.mxu0 %v124
  %144 = vmatprep.subr.bf16.mxu0 %v123
  %145 = vmatpush1.bf16.msra.mxu0 %v122
  %146 = vmatprep.subr.bf16.mxu0 %v121
  %147 = vmatpush1.bf16.msra.mxu0 %v120
  %148 = vmatprep.subr.bf16.mxu0 %v119
  %149 = vmatpush1.bf16.msra.mxu0 %v118
  %150 = vmatprep.subr.bf16.mxu0 %v117
  %151 = vmatpush1.bf16.msra.mxu0 %v116
  %152 = vmatprep.subr.bf16.mxu0 %v115
  %153 = vmatpush1.bf16.msra.mxu0 %v114
  %154 = vmatprep.subr.bf16.mxu0 %v113
  %155 = vmatpush1.bf16.msra.mxu0 %v112
  %156 = vmatprep.subr.bf16.mxu0 %v111
  %157 = vmatpush1.bf16.msra.mxu0 %v110
  %158 = vmatprep.subr.bf16.mxu0 0
  %159 = vmatpush2.bf16.msra.mxu0 0
  %160 = vmatprep.subr.bf16.mxu0 0
  %161 = vmatpush2.bf16.msra.mxu0 0
  %162 = vmatprep.subr.bf16.mxu0 0
  %163 = vmatpush2.bf16.msra.mxu0 0
  %164 = vmatprep.subr.bf16.mxu0 0
  %165 = vmatpush2.bf16.msra.mxu0 0
  %166 = vmatprep.subr.bf16.mxu0 0
  %167 = vmatpush2.bf16.msra.mxu0 0
  %168 = vmatprep.subr.bf16.mxu0 0
  %169 = vmatpush2.bf16.msra.mxu0 0
  %170 = vmatprep.subr.bf16.mxu0 0
  %171 = vmatpush2.bf16.msra.mxu0 0
  %172 = vmatprep.subr.bf16.mxu0 0
  %173 = vmatpush2.bf16.msra.mxu0 0
  %174 = vmatprep.mubr.bf16.mxu0 0
  %175 = vmatmul.mubr.bf16.gmra.mxu0 %v60
  %v176 = vpop.f32.mrf.mxu0
  %v177 = vadd.f32 %v49, %v176
  %v178 = vpop.f32.mrf.mxu0
  %v179 = vadd.f32 %v53, %v178
  %v180 = vpop.f32.mrf.mxu0
  %v181 = vadd.f32 %v49, %v180
  %v182 = vpop.f32.mrf.mxu0
  %v183 = vadd.f32 %v53, %v182
  %184 = vdwg.mxu0
  %v185 = vpack.c.bf16 %v181, %v177
  %v186 = vpack.c.bf16 %v183, %v179
  %v189 = vunpack.c.l.b16 %v185
  %v190 = vunpack.c.l.b16 %v186
  %v191 = vunpack.c.h.b16 %v185
  %v192 = vunpack.c.h.b16 %v186
  %v193 = vpack.c.b16 %v190, %v189
  %v194 = vpack.c.b16 %v192, %v191
  %197 = vst [vmem:[%s6] sm:$0xff] %v193
  %198 = vst [vmem:[%s6 + $0x8] sm:$0xff] %v194
  %v199 = vld [vmem:[%s1] sm:$0xf]
  %v200 = vld [vmem:[%s1 + $0x4] sm:$0xf]
  %v201 = vld [vmem:[%s4] sm:$0xf]
  %v202 = vld [vmem:[%s4 + $0x4] sm:$0xf]
  %v203 = vld [vmem:[%s4 + $0x8] sm:$0xf]
  %v204 = vld [vmem:[%s4 + $0xc] sm:$0xf]
  %v205 = vld [vmem:[%s4 + $0x10] sm:$0xf]
  %v206 = vld [vmem:[%s4 + $0x14] sm:$0xf]
  %v207 = vld [vmem:[%s4 + $0x18] sm:$0xf]
  %v208 = vld [vmem:[%s4 + $0x1c] sm:$0xf]
  %v209 = vld [vmem:[%s4 + $0x20] sm:$0xf]
  %v210 = vld [vmem:[%s4 + $0x24] sm:$0xf]
  %v211 = vld [vmem:[%s4 + $0x28] sm:$0xf]
  %v212 = vld [vmem:[%s4 + $0x2c] sm:$0xf]
  %v213 = vld [vmem:[%s4 + $0x30] sm:$0xf]
  %v214 = vld [vmem:[%s4 + $0x34] sm:$0xf]
  %v215 = vld [vmem:[%s4 + $0x38] sm:$0xf]
  %v216 = vld [vmem:[%s4 + $0x3c] sm:$0xf]
  %v217 = vld [vmem:[%s5] sm:$0x1]
  %v219 = vlaneseq
  %v220 = vshrl.u32 %v219, 7
  %v221 = vsub.s32 0, %v220
  %v222 = vrot.slane %v217, %v221
  %v226 = vunpack.c.l.b16 %v199
  %v227 = vunpack.c.l.b16 %v200
  %v228 = vpack.c.b16 %v227, %v226
  %v246 = vunpack.c.l.b16 %v201
  %v247 = vunpack.c.l.b16 %v202
  %v248 = vunpack.c.l.b16 %v203
  %v249 = vunpack.c.l.b16 %v204
  %v250 = vunpack.c.l.b16 %v205
  %v251 = vunpack.c.l.b16 %v206
  %v252 = vunpack.c.l.b16 %v207
  %v253 = vunpack.c.l.b16 %v208
  %v254 = vunpack.c.l.b16 %v209
  %v255 = vunpack.c.l.b16 %v210
  %v256 = vunpack.c.l.b16 %v211
  %v257 = vunpack.c.l.b16 %v212
  %v258 = vunpack.c.l.b16 %v213
  %v259 = vunpack.c.l.b16 %v214
  %v260 = vunpack.c.l.b16 %v215
  %v261 = vunpack.c.l.b16 %v216
  %v262 = vpack.c.b16 %v247, %v246
  %v263 = vpack.c.b16 %v249, %v248
  %v264 = vpack.c.b16 %v251, %v250
  %v265 = vpack.c.b16 %v253, %v252
  %v266 = vpack.c.b16 %v255, %v254
  %v267 = vpack.c.b16 %v257, %v256
  %v268 = vpack.c.b16 %v259, %v258
  %v269 = vpack.c.b16 %v261, %v260
  %278 = vmatprep.subr.bf16.mxu0 0
  %279 = vmatpush1.bf16.msra.mxu0 %v269
  %280 = vmatprep.subr.bf16.mxu0 0
  %281 = vmatpush1.bf16.msra.mxu0 %v268
  %282 = vmatprep.subr.bf16.mxu0 0
  %283 = vmatpush1.bf16.msra.mxu0 %v267
  %284 = vmatprep.subr.bf16.mxu0 0
  %285 = vmatpush1.bf16.msra.mxu0 %v266
  %286 = vmatprep.subr.bf16.mxu0 0
  %287 = vmatpush1.bf16.msra.mxu0 %v265
  %288 = vmatprep.subr.bf16.mxu0 0
  %289 = vmatpush1.bf16.msra.mxu0 %v264
  %290 = vmatprep.subr.bf16.mxu0 0
  %291 = vmatpush1.bf16.msra.mxu0 %v263
  %292 = vmatprep.subr.bf16.mxu0 0
  %293 = vmatpush1.bf16.msra.mxu0 %v262
  %294 = vmatprep.subr.bf16.mxu0 0
  %295 = vmatpush2.bf16.msra.mxu0 0
  %296 = vmatprep.subr.bf16.mxu0 0
  %297 = vmatpush2.bf16.msra.mxu0 0
  %298 = vmatprep.subr.bf16.mxu0 0
  %299 = vmatpush2.bf16.msra.mxu0 0
  %300 = vmatprep.subr.bf16.mxu0 0
  %301 = vmatpush2.bf16.msra.mxu0 0
  %302 = vmatprep.subr.bf16.mxu0 0
  %303 = vmatpush2.bf16.msra.mxu0 0
  %304 = vmatprep.subr.bf16.mxu0 0
  %305 = vmatpush2.bf16.msra.mxu0 0
  %306 = vmatprep.subr.bf16.mxu0 0
  %307 = vmatpush2.bf16.msra.mxu0 0
  %308 = vmatprep.subr.bf16.mxu0 0
  %309 = vmatpush2.bf16.msra.mxu0 0
  %310 = vmatprep.mubr.bf16.mxu0 0
  %311 = vmatmul.mubr.bf16.gmra.mxu0 %v228
  %v312 = vpop.f32.mrf.mxu0
  %v313 = vadd.f32 %v222, %v312
  %v314 = vpop.f32.mrf.mxu0
  %v315 = vpop.f32.mrf.mxu0
  %v316 = vadd.f32 %v222, %v315
  %v317 = vpop.f32.mrf.mxu0
  %318 = vdwg.mxu0
  %v319 = vpack.c.bf16 %v316, %v313
  %v321 = vunpack.c.l.b16 %v319
  %v322 = vunpack.c.h.b16 %v319
  %v323 = vpack.c.b16 %v321, %v321
  %v324 = vpack.c.b16 %v322, %v322
  %327 = vst [vmem:[%s7] sm:$0xf] %v323
  %328 = vst [vmem:[%s7 + $0x4] sm:$0xf] %v324
  // Predicated region
  $region26: #{custom_attention.2} parent=0 // pred_check
    _
  $region27: #{custom_attention.2} parent=0 // pred_check_branch
    %330 = sbr.rel (0) target = $region29
  $region28: #{custom_attention.2} parent=0 // pred_region
    _
  $region29: #{custom_attention.2} parent=0 // pred_fallthru
    _
  // Predicated region
  $region30: #{custom_attention.2} parent=0 // pred_check
    _
  $region31: #{custom_attention.2} parent=0 // pred_check_branch
    %332 = sbr.rel (0) target = $region33
  $region32: #{custom_attention.2} parent=0 // pred_region
    _
  $region33: #{custom_attention.2} parent=0 // pred_fallthru
    _
  // Predicated region
  $region34: #{custom_attention.2} parent=0 // pred_check
    _
  $region35: #{custom_attention.2} parent=0 // pred_check_branch
    %334 = sbr.rel (0) target = $region37
  $region36: #{custom_attention.2} parent=0 // pred_region
    _
  $region37: #{custom_attention.2} parent=0 // pred_fallthru
    _
  // Predicated region
  $region38: #{custom_attention.2} parent=0 // pred_check
    _
  $region39: #{custom_attention.2} parent=0 // pred_check_branch
    %336 = sbr.rel (0) target = $region41
  $region40: #{custom_attention.2} parent=0 // pred_region
    _
  $region41: #{custom_attention.2} parent=0 // pred_fallthru
    _

</llo_original>
